<compile_context>
chip_gen: v6e
topology: v6e:2x2x1
jax: 0.10.0
libtpu: 0.0.40
codegen_flags: <defaults>
</compile_context>

<pallas_src>
import functools

import jax
import jax.numpy as jnp
from jax.experimental import pallas as pl
from jax.experimental.pallas import tpu as pltpu


def _round_up(x, m):
    return (x + m - 1) // m * m


# ---------------------------------------------------------------------------
# Pass 1: Linear (bias omitted; BN training-mode mean subtraction cancels it)
#         + per-column sum and sum-of-squares accumulation (single traversal).
# ---------------------------------------------------------------------------
def _linear_stats_kernel(x_ref, w_ref, y_ref, sum_ref, sq_ref):
    @pl.when(pl.program_id(0) == 0)
    def _():
        sum_ref[...] = jnp.zeros_like(sum_ref)
        sq_ref[...] = jnp.zeros_like(sq_ref)

    y = jnp.dot(x_ref[...], w_ref[...], preferred_element_type=jnp.float32)
    y_ref[...] = y
    # One pass: sum(y) and sum(y*y); mean/var derived outside (E[y^2] - E[y]^2).
    sum_ref[...] += jnp.sum(y, axis=0, keepdims=True)
    sq_ref[...] += jnp.sum(y * y, axis=0, keepdims=True)


# ---------------------------------------------------------------------------
# Pass 2: fused BatchNorm affine + inverted dropout + ReLU.
#   scale/shift already fold gamma*rsqrt(var+eps), beta - mean*..., and 1/(1-p),
#   so the per-element work is: mul, add, uint compare, max, select.
# ---------------------------------------------------------------------------
def _bn_dropout_act_kernel(scale_ref, shift_ref, y_ref, bits_ref, o_ref, *,
                           keep_threshold):
    z = y_ref[...] * scale_ref[...] + shift_ref[...]          # z = BN(y) / (1-p)
    keep = bits_ref[...] < jnp.uint32(keep_threshold)         # integer threshold
    # ReLU(dropout(BN(y))) == where(keep, max(z, 0), 0)
    # TODO(synk): module takes a generic `activation`; fixed to ReLU here.
    o_ref[...] = jnp.where(keep, jnp.maximum(z, 0.0), 0.0).astype(o_ref.dtype)


def classification_block(x, w, gamma, beta, key, *, p=0.1, eps=1e-5,
                         block_rows=512, vmem_limit_bytes=32 * 1024 * 1024):
    """Forward pass of ClassificationBlock (BN in training mode, dropout active).

    x:     (N, in_features) float32
    w:     (in_features, 256) float32  -- Linear weight stored transposed vs PyTorch
    gamma: (256,) float32              -- BatchNorm1d weight
    beta:  (256,) float32              -- BatchNorm1d bias
    key:   jax.random key for the dropout mask

    The Linear bias is intentionally not an input: with training-mode BatchNorm
    (batch statistics), y - mean(y) cancels any per-column constant exactly.
    TODO(synk): BatchNorm running_mean/running_var buffer updates (training side
    effect) are not produced; only the forward tensor is returned.
    """
    n, k = x.shape
    c = w.shape[1]
    assert c == 256, "BatchNorm1d(256) pins out_features to 256"

    # Row tile: large enough for BlockSpec double-buffer pipelining, never below
    # the (8, 128) sublane rule; feature dim (256 lanes) is never split.
    tm = min(block_rows, _round_up(n, 8))
    n_pad = _round_up(n, tm)
    if n_pad != n:
        # Zero rows contribute 0 to sum / sum-of-squares (no bias), so the batch
        # statistics stay exact as long as we divide by the true N below.
        x = jnp.pad(x, ((0, n_pad - n), (0, 0)))
    grid = (n_pad // tm,)

    # ------------------- Pass 1: matmul + column statistics -------------------
    y, col_sum, col_sq = pl.pallas_call(
        _linear_stats_kernel,
        out_shape=(
            jax.ShapeDtypeStruct((n_pad, c), jnp.float32),
            jax.ShapeDtypeStruct((1, c), jnp.float32),
            jax.ShapeDtypeStruct((1, c), jnp.float32),
        ),
        grid=grid,
        in_specs=[
            pl.BlockSpec((tm, k), lambda i: (i, 0)),   # x row tile (pipelined)
            pl.BlockSpec((k, c), lambda i: (0, 0)),    # W resident in VMEM
        ],
        out_specs=(
            pl.BlockSpec((tm, c), lambda i: (i, 0)),   # y row tile (lane-dense)
            pl.BlockSpec((1, c), lambda i: (0, 0)),    # sum accumulator
            pl.BlockSpec((1, c), lambda i: (0, 0)),    # sum-of-squares accumulator
        ),
        compiler_params=pltpu.CompilerParams(
            dimension_semantics=("arbitrary",),        # stats accumulate across tiles
            vmem_limit_bytes=vmem_limit_bytes,
        ),
        cost_estimate=pl.CostEstimate(
            flops=2 * n_pad * k * c,
            transcendentals=0,
            bytes_accessed=4 * (n_pad * k + k * c + n_pad * c + 2 * c),
        ),
    )(x, w)

    # ------ Fold BN affine + dropout scaling into per-column (scale, shift) ------
    # 256-wide, computed once (PyTorch training-mode BN uses biased variance).
    inv_n = jnp.float32(1.0 / n)
    mean = col_sum * inv_n
    var = jnp.maximum(col_sq * inv_n - mean * mean, 0.0)
    inv_std = jax.lax.rsqrt(var + jnp.float32(eps))
    keep_scale = jnp.float32(1.0 / (1.0 - p))
    g = gamma.reshape(1, c).astype(jnp.float32)
    scale = g * inv_std * keep_scale
    shift = (beta.reshape(1, c).astype(jnp.float32) - mean * g * inv_std) * keep_scale

    # Integer dropout threshold: keep iff bits / 2^32 < (1 - p).
    keep_threshold = min(int(round((1.0 - p) * 4294967296.0)), 4294967295)
    bits = jax.random.bits(key, (n_pad, c), dtype=jnp.uint32)

    # ------------------- Pass 2: normalize + dropout + ReLU -------------------
    out = pl.pallas_call(
        functools.partial(_bn_dropout_act_kernel, keep_threshold=keep_threshold),
        out_shape=jax.ShapeDtypeStruct((n_pad, c), jnp.float32),
        grid=grid,
        in_specs=[
            pl.BlockSpec((1, c), lambda i: (0, 0)),    # scale (resident)
            pl.BlockSpec((1, c), lambda i: (0, 0)),    # shift (resident)
            pl.BlockSpec((tm, c), lambda i: (i, 0)),   # y row tile
            pl.BlockSpec((tm, c), lambda i: (i, 0)),   # dropout bits row tile
        ],
        out_specs=pl.BlockSpec((tm, c), lambda i: (i, 0)),
        compiler_params=pltpu.CompilerParams(
            dimension_semantics=("parallel",),         # rows independent -> megacore
            vmem_limit_bytes=vmem_limit_bytes,
        ),
        cost_estimate=pl.CostEstimate(
            flops=5 * n_pad * c,
            transcendentals=0,
            bytes_accessed=4 * (3 * n_pad * c + 2 * c),
        ),
    )(scale, shift, y, bits)

    return out[:n]


if __name__ == "__main__":
    root = jax.random.PRNGKey(0)
    k_x, k_w, k_b, k_g, k_be, k_drop = jax.random.split(root, 6)

    N, IN_F, OUT_F = 8, 32, 256   # BatchNorm1d(256) fixes out_features = 256

    x = jax.random.normal(k_x, (N, IN_F), dtype=jnp.float32)
    w = jax.random.normal(k_w, (IN_F, OUT_F), dtype=jnp.float32) / jnp.sqrt(IN_F)
    b = 0.01 * jax.random.normal(k_b, (OUT_F,), dtype=jnp.float32)  # reference only
    gamma = 1.0 + 0.01 * jax.random.normal(k_g, (OUT_F,), dtype=jnp.float32)
    beta = 0.01 * jax.random.normal(k_be, (OUT_F,), dtype=jnp.float32)

    out = classification_block(x, w, gamma, beta, k_drop)
    out = jax.block_until_ready(out)

    # ---- plain-JAX reference (full module semantics, incl. the Linear bias;
    #      the bias cancels under training-mode BN so it matches the kernel) ----
    y_ref = x @ w + b
    mean = jnp.mean(y_ref, axis=0, keepdims=True)
    var = jnp.mean((y_ref - mean) ** 2, axis=0, keepdims=True)      # biased (BN train)
    bn = (y_ref - mean) * jax.lax.rsqrt(var + 1e-5) * gamma + beta
    bits = jax.random.bits(k_drop, (N, OUT_F), dtype=jnp.uint32)    # N == n_pad here
    keep = bits < jnp.uint32(min(int(round(0.9 * 4294967296.0)), 4294967295))
    ref = jnp.maximum(jnp.where(keep, bn / 0.9, 0.0), 0.0)

    assert out.shape == (N, OUT_F)
    assert bool(jnp.all(jnp.isfinite(out)))
    assert bool(jnp.all(out >= 0.0))                                # ReLU output
    # Loose tolerance to accommodate MXU default-precision matmul differences.
    assert bool(jnp.allclose(out, ref, atol=2e-2, rtol=2e-2))
    print("KERNEL_OK")
</pallas_src>

<mosaic_0001>
module attributes {stable_mosaic.version = 11 : i64} {
  func.func @_linear_stats_kernel(%arg0: i32, %arg1: memref<8x32xf32, #tpu.memory_space<vmem>>, %arg2: memref<32x256xf32, #tpu.memory_space<vmem>>, %arg3: memref<8x256xf32, #tpu.memory_space<vmem>>, %arg4: memref<1x256xf32, #tpu.memory_space<vmem>>, %arg5: memref<1x256xf32, #tpu.memory_space<vmem>>) attributes {dimension_semantics = [#tpu.dimension_semantics<arbitrary>], iteration_bounds = array<i64: 1>, scalar_prefetch = 0 : i64, scratch_operands = 0 : i64, tpu.core_type = #tpu.core_type<tc>, window_params = [{transform_indices = @transform_0, window_bounds = array<i64: 8, 32>}, {pipeline_mode = #tpu.pipeline_mode<synchronous>, transform_indices = @transform_1, window_bounds = array<i64: 32, 256>}, {transform_indices = @transform_2, window_bounds = array<i64: 8, 256>}, {pipeline_mode = #tpu.pipeline_mode<synchronous>, transform_indices = @transform_3, window_bounds = array<i64: 1, 256>}, {pipeline_mode = #tpu.pipeline_mode<synchronous>, transform_indices = @transform_4, window_bounds = array<i64: 1, 256>}]} {
    %c0_i32 = arith.constant 0 : i32
    %0 = arith.cmpi eq, %arg0, %c0_i32 : i32
    %1 = arith.extui %0 : i1 to i32
    %c0_i32_0 = arith.constant 0 : i32
    %2 = arith.cmpi ne, %1, %c0_i32_0 : i32
    scf.if %2 {
      %cst_16 = arith.constant 0.000000e+00 : f32
      %18 = vector.broadcast %cst_16 : f32 to vector<1x256xf32>
      %c0_17 = arith.constant 0 : index
      %c0_18 = arith.constant 0 : index
      %19 = vector.load %arg4[%c0_17, %c0_18] : memref<1x256xf32, #tpu.memory_space<vmem>>, vector<1x256xf32>
      tpu.vector_store %arg4[%c0_17, %c0_18], %18 {strides = array<i32>} : memref<1x256xf32, #tpu.memory_space<vmem>>, vector<1x256xf32>,
      %cst_19 = arith.constant 0.000000e+00 : f32
      %20 = vector.broadcast %cst_19 : f32 to vector<1x256xf32>
      %c0_20 = arith.constant 0 : index
      %c0_21 = arith.constant 0 : index
      %21 = vector.load %arg5[%c0_20, %c0_21] : memref<1x256xf32, #tpu.memory_space<vmem>>, vector<1x256xf32>
      tpu.vector_store %arg5[%c0_20, %c0_21], %20 {strides = array<i32>} : memref<1x256xf32, #tpu.memory_space<vmem>>, vector<1x256xf32>,
    } else {
    }
    %c0 = arith.constant 0 : index
    %c0_1 = arith.constant 0 : index
    %3 = vector.load %arg1[%c0, %c0_1] : memref<8x32xf32, #tpu.memory_space<vmem>>, vector<8x32xf32>
    %c0_2 = arith.constant 0 : index
    %c0_3 = arith.constant 0 : index
    %4 = vector.load %arg2[%c0_2, %c0_3] : memref<32x256xf32, #tpu.memory_space<vmem>>, vector<32x256xf32>
    %cst = arith.constant dense<0.000000e+00> : vector<8x256xf32>
    %5 = tpu.matmul %3, %4, %cst {dimension_numbers = #tpu.dot_dimension_numbers<[1], [0], [0], [1], [0, 0, 1, 1], [], []>} : vector<8x32xf32>, vector<32x256xf32>, vector<8x256xf32> -> vector<8x256xf32>
    %c0_4 = arith.constant 0 : index
    %c0_5 = arith.constant 0 : index
    %6 = vector.load %arg3[%c0_4, %c0_5] : memref<8x256xf32, #tpu.memory_space<vmem>>, vector<8x256xf32>
    tpu.vector_store %arg3[%c0_4, %c0_5], %5 {strides = array<i32>} : memref<8x256xf32, #tpu.memory_space<vmem>>, vector<8x256xf32>,
    %c0_6 = arith.constant 0 : index
    %c0_7 = arith.constant 0 : index
    %7 = vector.load %arg4[%c0_6, %c0_7] : memref<1x256xf32, #tpu.memory_space<vmem>>, vector<1x256xf32>
    %cst_8 = arith.constant dense<0.000000e+00> : vector<256xf32>
    %8 = vector.multi_reduction <add>, %5, %cst_8 [0] : vector<8x256xf32> to vector<256xf32>
    %9 = vector.shape_cast %8 : vector<256xf32> to vector<1x256xf32>
    %10 = arith.addf %7, %9 : vector<1x256xf32>
    %c0_9 = arith.constant 0 : index
    %c0_10 = arith.constant 0 : index
    %11 = vector.load %arg4[%c0_9, %c0_10] : memref<1x256xf32, #tpu.memory_space<vmem>>, vector<1x256xf32>
    tpu.vector_store %arg4[%c0_9, %c0_10], %10 {strides = array<i32>} : memref<1x256xf32, #tpu.memory_space<vmem>>, vector<1x256xf32>,
    %c0_11 = arith.constant 0 : index
    %c0_12 = arith.constant 0 : index
    %12 = vector.load %arg5[%c0_11, %c0_12] : memref<1x256xf32, #tpu.memory_space<vmem>>, vector<1x256xf32>
    %13 = arith.mulf %5, %5 : vector<8x256xf32>
    %cst_13 = arith.constant dense<0.000000e+00> : vector<256xf32>
    %14 = vector.multi_reduction <add>, %13, %cst_13 [0] : vector<8x256xf32> to vector<256xf32>
    %15 = vector.shape_cast %14 : vector<256xf32> to vector<1x256xf32>
    %16 = arith.addf %12, %15 : vector<1x256xf32>
    %c0_14 = arith.constant 0 : index
    %c0_15 = arith.constant 0 : index
    %17 = vector.load %arg5[%c0_14, %c0_15] : memref<1x256xf32, #tpu.memory_space<vmem>>, vector<1x256xf32>
    tpu.vector_store %arg5[%c0_14, %c0_15], %16 {strides = array<i32>} : memref<1x256xf32, #tpu.memory_space<vmem>>, vector<1x256xf32>,
    return
  }
  func.func @transform_0(%arg0: i32) -> (i32, i32) {
    %c0_i32 = arith.constant 0 : i32
    %c0_i32_0 = arith.constant 0 : i32
    return %arg0, %c0_i32 : i32, i32
  }
  func.func @transform_1(%arg0: i32) -> (i32, i32) {
    %c0_i32 = arith.constant 0 : i32
    %c0_i32_0 = arith.constant 0 : i32
    %c0_i32_1 = arith.constant 0 : i32
    return %c0_i32, %c0_i32_0 : i32, i32
  }
  func.func @transform_2(%arg0: i32) -> (i32, i32) {
    %c0_i32 = arith.constant 0 : i32
    %c0_i32_0 = arith.constant 0 : i32
    return %arg0, %c0_i32 : i32, i32
  }
  func.func @transform_3(%arg0: i32) -> (i32, i32) {
    %c0_i32 = arith.constant 0 : i32
    %c0_i32_0 = arith.constant 0 : i32
    %c0_i32_1 = arith.constant 0 : i32
    return %c0_i32, %c0_i32_0 : i32, i32
  }
  func.func @transform_4(%arg0: i32) -> (i32, i32) {
    %c0_i32 = arith.constant 0 : i32
    %c0_i32_0 = arith.constant 0 : i32
    %c0_i32_1 = arith.constant 0 : i32
    return %c0_i32, %c0_i32_0 : i32, i32
  }
}

</mosaic_0001>

<llo_original>
// kernel: tpu_custom_call.1
$region0: #{tpu_custom_call.1}
  #allocation0 [shape = 'u32[]', space=smem, size = 0x4, offset = 0x4, fixed_abs, tag = 'smem constant byte address 0x4 - core index']
  #allocation1 [shape = 'u32[144,128]{1,0:T(1,128)}', space=vmem, size = 0x12000, scoped, tag = 'internal scratch']
  %s0 = inlined_call_operand.hbm [shape: f32[8,32], index: 0, kind: input, shape index: {}]
  %s1 = inlined_call_operand.hbm [shape: f32[32,256], index: 1, kind: input, shape index: {}]
  %s2 = inlined_call_operand.hbm [shape: f32[8,256], index: 2, kind: output, shape index: {0}]
  %s3 = inlined_call_operand.hbm [shape: f32[1,256], index: 3, kind: output, shape index: {1}]
  %s4 = inlined_call_operand.hbm [shape: f32[1,256], index: 4, kind: output, shape index: {2}]
  %5 = xla_tuple %s2, %s3, %s4
  %s6 = sld [smem:[#allocation0]]
  $region46: #{tpu_custom_call.1} parent=0
    _
  %s8 = ssub.s32 1, %s6
  %s9 = scalar_select 0, %s8, %s6
  $region1: #{tpu_custom_call.1} parent=0
    #allocation2 [shape = 'u8[4096]{0}', space=vmem, size = 0x1000, scoped, tag = 'input window, operand 0, single buffered']
    #allocation3 [shape = 's32[1]{0}', space=sflag, size = 0x4, scoped, tag = 'scoped memory for tpu_custom_call.1']
    #allocation4 [shape = 's32[1]{0}', space=sflag, size = 0x4, scoped, tag = 'scoped memory for tpu_custom_call.1']
    #allocation5 [shape = 'u8[32768]{0}', space=vmem, size = 0x8000, scoped, tag = 'input window, operand 1, single buffered']
    #allocation6 [shape = 's32[1]{0}', space=sflag, size = 0x4, scoped, tag = 'scoped memory for tpu_custom_call.1']
    #allocation7 [shape = 'u8[8192]{0}', space=vmem, size = 0x2000, scoped, tag = 'output window, operand 0, single buffered']
    #allocation8 [shape = 'u8[1024]{0}', space=vmem, size = 0x400, scoped, tag = 'output window, operand 1, single buffered']
    #allocation9 [shape = 's32[1]{0}', space=sflag, size = 0x4, scoped, tag = 'scoped memory for tpu_custom_call.1']
    #allocation10 [shape = 'u8[1024]{0}', space=vmem, size = 0x400, scoped, tag = 'output window, operand 2, single buffered']
    %10 = vsyncpa [#allocation3], 0
    %11 = vsyncpa [#allocation6], 0
    %12 = vsyncpa [#allocation4], 0
    %13 = vsyncpa [#allocation9], 0
    // Predicated region
    $region2: #{tpu_custom_call.1} parent=1 // pred_check
      _
    $region3: #{tpu_custom_call.1} parent=1 // pred_check_branch
      %15 = sbr.rel (0) target = $region5
    $region4: #{tpu_custom_call.1} parent=1 // pred_region
      %s17 = ssub.s32 128, 128
      %18 = vsyncadd [#allocation3], %s17
      %s20 = sshll.u32 [#allocation2], 4
      %s21 = int_to_ptr.vmem [resolvable:$true] %s20
      %23 = dma.hbm_to_vmem [thread:$0]  %s0, 128, %s21, [#allocation3]
    $region5: #{tpu_custom_call.1} parent=1 // pred_fallthru
      _
    // Predicated region
    $region6: #{tpu_custom_call.1} parent=1 // pred_check
      _
    $region7: #{tpu_custom_call.1} parent=1 // pred_check_branch
      %25 = sbr.rel (0) target = $region9
    $region8: #{tpu_custom_call.1} parent=1 // pred_region
      %s27 = ssub.s32 1024, 1024
      %28 = vsyncadd [#allocation6], %s27
      %s29 = sshll.u32 [#allocation5], 4
      %s30 = int_to_ptr.vmem [resolvable:$true] %s29
      %35 = dma.hbm_to_vmem [thread:$0]  %s1, 1024, %s30, [#allocation6], 256, 256, 16
    $region9: #{tpu_custom_call.1} parent=1 // pred_fallthru
      _
    // Predicated region
    $region10: #{tpu_custom_call.1} parent=1 // pred_check
      _
    $region11: #{tpu_custom_call.1} parent=1 // pred_check_branch
      %37 = sbr.rel (0) target = $region13
    $region12: #{tpu_custom_call.1} parent=1 // pred_region
      %38 = dma.done [#allocation3], 128
    $region13: #{tpu_custom_call.1} parent=1 // pred_fallthru
      _
    // Predicated region
    $region14: #{tpu_custom_call.1} parent=1 // pred_check
      _
    $region15: #{tpu_custom_call.1} parent=1 // pred_check_branch
      %40 = sbr.rel (0) target = $region17
    $region16: #{tpu_custom_call.1} parent=1 // pred_region
      %41 = dma.done [#allocation6], 1024
    $region17: #{tpu_custom_call.1} parent=1 // pred_fallthru
      _
    %p42 = scmp.eq.s32.totalorder 0, 0
    // Predicated region
    $region18: #{tpu_custom_call.1} parent=1 // pred_check
      %p43 = pneg %p42
    $region19: #{tpu_custom_call.1} parent=1 // pred_check_branch
      %45 = sbr.rel (%p43) target = $region21
    $region20: #{tpu_custom_call.1} parent=1 // pred_region
      %v46 = vlaneseq
      %vm47 = vcmp.ge.s32.totalorder %v46, 0
      %vm48 = vcmp.lt.s32.totalorder %v46, 256
      %vm49 = vmand %vm47, %vm48
      %50 = vst.msk [vmem:[#allocation8] sm:$0x3] %vm49, 0.0
      %51 = vst.msk [vmem:[#allocation10] sm:$0x3] %vm49, 0.0
    $region21: #{tpu_custom_call.1} parent=1 // pred_fallthru
      _
    %v52 = vld [vmem:[#allocation2] sm:$0xff]
    %v53 = vld [vmem:[#allocation5] sm:$0xff]
    %v54 = vld [vmem:[#allocation5 + $0x8] sm:$0xff]
    %v55 = vld [vmem:[#allocation5 + $0x10] sm:$0xff]
    %v56 = vld [vmem:[#allocation5 + $0x18] sm:$0xff]
    %v57 = vld [vmem:[#allocation5 + $0x20] sm:$0xff]
    %v58 = vld [vmem:[#allocation5 + $0x28] sm:$0xff]
    %v59 = vld [vmem:[#allocation5 + $0x30] sm:$0xff]
    %v60 = vld [vmem:[#allocation5 + $0x38] sm:$0xff]
    %vm61 = vcmask 261120
    %v63 = vsel %vm61, %v52, 0
    %65 = vmatprep.subr.mxu0 0.0
    %66 = vmatpush1.msra.mxu0 0.0
    %67 = vmatprep.subr.mxu0 0.0
    %68 = vmatpush1.msra.mxu0 0.0
    %69 = vmatprep.subr.mxu0 0.0
    %70 = vmatpush1.msra.mxu0 0.0
    %71 = vmatprep.subr.mxu0 0.0
    %72 = vmatpush1.msra.mxu0 0.0
    %73 = vmatprep.subr.mxu0 0.0
    %74 = vmatpush1.msra.mxu0 0.0
    %75 = vmatprep.subr.mxu0 0.0
    %76 = vmatpush1.msra.mxu0 0.0
    %77 = vmatprep.subr.mxu0 0.0
    %78 = vmatpush1.msra.mxu0 0.0
    %79 = vmatprep.subr.mxu0 0.0
    %80 = vmatpush1.msra.mxu0 0.0
    %81 = vmatprep.subr.mxu0 0.0
    %82 = vmatpush1.msra.mxu0 0.0
    %83 = vmatprep.subr.mxu0 0.0
    %84 = vmatpush1.msra.mxu0 0.0
    %85 = vmatprep.subr.mxu0 0.0
    %86 = vmatpush1.msra.mxu0 0.0
    %87 = vmatprep.subr.mxu0 0.0
    %88 = vmatpush1.msra.mxu0 0.0
    %89 = vmatprep.subr.mxu0 %v60
    %90 = vmatpush1.msra.mxu0 %v59
    %91 = vmatprep.subr.mxu0 %v58
    %92 = vmatpush1.msra.mxu0 %v57
    %93 = vmatprep.subr.mxu0 %v56
    %94 = vmatpush1.msra.mxu0 %v55
    %95 = vmatprep.subr.mxu0 %v54
    %96 = vmatpush1.msra.mxu0 %v53
    %97 = vmatprep.subr.mxu0 0.0
    %98 = vmatpush2.msra.mxu0 0.0
    %99 = vmatprep.subr.mxu0 0.0
    %100 = vmatpush2.msra.mxu0 0.0
    %101 = vmatprep.subr.mxu0 0.0
    %102 = vmatpush2.msra.mxu0 0.0
    %103 = vmatprep.subr.mxu0 0.0
    %104 = vmatpush2.msra.mxu0 0.0
    %105 = vmatprep.subr.mxu0 0.0
    %106 = vmatpush2.msra.mxu0 0.0
    %107 = vmatprep.subr.mxu0 0.0
    %108 = vmatpush2.msra.mxu0 0.0
    %109 = vmatprep.subr.mxu0 0.0
    %110 = vmatpush2.msra.mxu0 0.0
    %111 = vmatprep.subr.mxu0 0.0
    %112 = vmatpush2.msra.mxu0 0.0
    %113 = vmatprep.subr.mxu0 0.0
    %114 = vmatpush2.msra.mxu0 0.0
    %115 = vmatprep.subr.mxu0 0.0
    %116 = vmatpush2.msra.mxu0 0.0
    %117 = vmatprep.subr.mxu0 0.0
    %118 = vmatpush2.msra.mxu0 0.0
    %119 = vmatprep.subr.mxu0 0.0
    %120 = vmatpush2.msra.mxu0 0.0
    %121 = vmatprep.subr.mxu0 0.0
    %122 = vmatpush2.msra.mxu0 0.0
    %123 = vmatprep.subr.mxu0 0.0
    %124 = vmatpush2.msra.mxu0 0.0
    %125 = vmatprep.subr.mxu0 0.0
    %126 = vmatpush2.msra.mxu0 0.0
    %127 = vmatprep.subr.mxu0 0.0
    %128 = vmatpush2.msra.mxu0 0.0
    %129 = vmatprep.mubr.f32.mxu0 0.0
    %130 = vmatmul.mubr.f32.gmra.mxu0 %v63
    %v131 = vpop.f32.mrf.mxu0
    %v132 = vadd.f32 0.0, %v131
    %v133 = vpop.f32.mrf.mxu0
    %v134 = vadd.f32 0.0, %v133
    %135 = vdwg.mxu0
    %136 = vst [vmem:[#allocation7] sm:$0xff] %v132
    %137 = vst [vmem:[#allocation7 + $0x8] sm:$0xff] %v134
    %v138 = vld [vmem:[#allocation8] sm:$0x3]
    %v139 = vrot.slane %v132, 4
    %v140 = vadd.f32 %v132, %v139
    %v141 = vrot.slane %v140, 2
    %v142 = vadd.f32 %v140, %v141
    %v143 = vrot.slane %v142, 1
    %v144 = vadd.f32 %v142, %v143
    %v145 = vrot.slane %v134, 4
    %v146 = vadd.f32 %v134, %v145
    %v147 = vrot.slane %v146, 2
    %v148 = vadd.f32 %v146, %v147
    %v149 = vrot.slane %v148, 1
    %v150 = vadd.f32 %v148, %v149
    %v153 = vcombine.low %v144, %v150
    %v155 = vunpack.c.l.s4 1966171168
    %v156 = vunpack.c.0.s8 %v155
    %v157 = vlaneseq
    %v158 = vshrl.u32 %v157, 7
    %v159 = vsub.s32 %v156, %v158
    %v160 = vrot.slane %v153, %v159
    %v162 = vunpack.c.l.s4 1966171168
    %v163 = vunpack.c.0.s8 %v162
    %v164 = vlaneseq
    %v165 = vshrl.u32 %v164, 7
    %v166 = vsub.s32 %v163, %v165
    %v167 = vrot.slane %v160, %v166
    %v169 = vadd.f32 %v138, %v167
    %v170 = vlaneseq
    %vm171 = vcmp.ge.s32.totalorder %v170, 0
    %vm172 = vcmp.lt.s32.totalorder %v170, 256
    %vm173 = vmand %vm171, %vm172
    %174 = vst.msk [vmem:[#allocation8] sm:$0x3] %vm173, %v169
    %v175 = vld [vmem:[#allocation10] sm:$0x3]
    %v176 = vmul.f32 %v132, %v132
    %v177 = vmul.f32 %v134, %v134
    %v178 = vrot.slane %v176, 4
    %v179 = vadd.f32 %v176, %v178
    %v180 = vrot.slane %v179, 2
    %v181 = vadd.f32 %v179, %v180
    %v182 = vrot.slane %v181, 1
    %v183 = vadd.f32 %v181, %v182
    %v184 = vrot.slane %v177, 4
    %v185 = vadd.f32 %v177, %v184
    %v186 = vrot.slane %v185, 2
    %v187 = vadd.f32 %v185, %v186
    %v188 = vrot.slane %v187, 1
    %v189 = vadd.f32 %v187, %v188
    %v192 = vcombine.low %v183, %v189
    %v194 = vunpack.c.l.s4 1966171168
    %v195 = vunpack.c.0.s8 %v194
    %v196 = vlaneseq
    %v197 = vshrl.u32 %v196, 7
    %v198 = vsub.s32 %v195, %v197
    %v199 = vrot.slane %v192, %v198
    %v201 = vunpack.c.l.s4 1966171168
    %v202 = vunpack.c.0.s8 %v201
    %v203 = vlaneseq
    %v204 = vshrl.u32 %v203, 7
    %v205 = vsub.s32 %v202, %v204
    %v206 = vrot.slane %v199, %v205
    %v208 = vadd.f32 %v175, %v206
    %209 = vst.msk [vmem:[#allocation10] sm:$0x3] %vm173, %v208
    // Predicated region
    $region22: #{tpu_custom_call.1} parent=1 // pred_check
      _
    $region23: #{tpu_custom_call.1} parent=1 // pred_check_branch
      %211 = sbr.rel (0) target = $region25
    $region24: #{tpu_custom_call.1} parent=1 // pred_region
      %s213 = ssub.s32 256, 256
      %214 = vsyncadd [#allocation4], %s213
      %s216 = sshll.u32 [#allocation7], 4
      %s217 = int_to_ptr.vmem [resolvable:$true] %s216
      %219 = dma.vmem_to_hbm [thread:$0]  %s217, 256, %s2, [#allocation4]
    $region25: #{tpu_custom_call.1} parent=1 // pred_fallthru
      _
    // Predicated region
    $region26: #{tpu_custom_call.1} parent=1 // pred_check
      _
    $region27: #{tpu_custom_call.1} parent=1 // pred_check_branch
      %221 = sbr.rel (0) target = $region29
    $region28: #{tpu_custom_call.1} parent=1 // pred_region
      %s223 = ssub.s32 32, 32
      %224 = vsyncadd [#allocation9], %s223
      %s226 = sshll.u32 [#allocation8], 4
      %s227 = int_to_ptr.vmem [resolvable:$true] %s226
      %229 = dma.vmem_to_hbm [thread:$0]  %s227, 32, %s3, [#allocation9]
    $region29: #{tpu_custom_call.1} parent=1 // pred_fallthru
      _
    // Predicated region
    $region30: #{tpu_custom_call.1} parent=1 // pred_check
      _
    $region31: #{tpu_custom_call.1} parent=1 // pred_check_branch
      %231 = sbr.rel (0) target = $region33
    $region32: #{tpu_custom_call.1} parent=1 // pred_region
      %s233 = ssub.s32 32, 32
      %234 = vsyncadd [#allocation9], %s233
      %s236 = sshll.u32 [#allocation10], 4
      %s237 = int_to_ptr.vmem [resolvable:$true] %s236
      %239 = dma.vmem_to_hbm [thread:$0]  %s237, 32, %s4, [#allocation9]
    $region33: #{tpu_custom_call.1} parent=1 // pred_fallthru
      _
    // Predicated region
    $region34: #{tpu_custom_call.1} parent=1 // pred_check
      _
    $region35: #{tpu_custom_call.1} parent=1 // pred_check_branch
      %241 = sbr.rel (0) target = $region37
    $region36: #{tpu_custom_call.1} parent=1 // pred_region
      %242 = dma.done [#allocation4], 256
    $region37: #{tpu_custom_call.1} parent=1 // pred_fallthru
      _
    // Predicated region
    $region38: #{tpu_custom_call.1} parent=1 // pred_check
      _
    $region39: #{tpu_custom_call.1} parent=1 // pred_check_branch
      %244 = sbr.rel (0) target = $region41
    $region40: #{tpu_custom_call.1} parent=1 // pred_region
      %245 = dma.done [#allocation9], 32
    $region41: #{tpu_custom_call.1} parent=1 // pred_fallthru
      _
    // Predicated region
    $region42: #{tpu_custom_call.1} parent=1 // pred_check
      _
    $region43: #{tpu_custom_call.1} parent=1 // pred_check_branch
      %247 = sbr.rel (0) target = $region45
    $region44: #{tpu_custom_call.1} parent=1 // pred_region
      %248 = dma.done [#allocation9], 32
    $region45: #{tpu_custom_call.1} parent=1 // pred_fallthru
      _
    %249 = vsyncpa [#allocation3], 1
    %250 = vsyncpa [#allocation6], 1
    %251 = vsyncpa [#allocation4], 1
    %252 = vsyncpa [#allocation9], 1

</llo_original>
